<compile_context>
chip_gen: v5e
topology: v5e:2x2
jax: 0.10.0
libtpu: 0.0.40
codegen_flags: <defaults>
</compile_context>

<pallas_src>
import functools

import jax
import jax.numpy as jnp
from jax.experimental import pallas as pl
from jax.experimental.pallas import tpu as pltpu


def _round_up(x, m):
    return ((x + m - 1) // m) * m


def _cheby_kan_kernel(x_ref, w_ref, b_ref, o_ref, t_ref, *, degree, c_pad):
    # x_ref: (tm, C_pad)          input batch tile
    # w_ref: (degree*C_pad, tn)   fused weight tile (degree-major rows)
    # b_ref: (1, tn)              degree-0 bias tile (f32)
    # o_ref: (tm, tn)             output tile
    # t_ref: (tm, degree*C_pad)   persistent VMEM scratch in weight dtype

    # Feature expansion only once per batch tile (j == 0); the scratch persists
    # across the inner ("arbitrary") output-tile axis.
    @pl.when(pl.program_id(1) == 0)
    def _():
        x = x_ref[...].astype(jnp.float32)
        t = jnp.tanh(jnp.tanh(x))                          # T_1, |t| < 1 (f32 VPU)
        t_ref[:, 0:c_pad] = t.astype(t_ref.dtype)
        t_prev, t_cur = jnp.ones_like(t), t
        for d in range(2, degree + 1):
            t_next = 2.0 * t * t_cur - t_prev              # T_d recurrence (f32)
            t_ref[:, (d - 1) * c_pad:d * c_pad] = t_next.astype(t_ref.dtype)
            t_prev, t_cur = t_cur, t_next

    # One fused MXU matmul over all degrees; f32 accumulation.
    acc = jnp.dot(t_ref[...], w_ref[...], preferred_element_type=jnp.float32)
    acc = acc + b_ref[...].astype(jnp.float32)             # degree-0 bias
    o_ref[...] = acc.astype(o_ref.dtype)


def cheby_kan_linear(x, cheby_coeffs, *, weight_dtype=None):
    """x: (B, input_dim), cheby_coeffs: (input_dim, output_dim, degree+1)."""
    B, C = x.shape
    Ci, O, Dp1 = cheby_coeffs.shape
    assert Ci == C
    degree = Dp1 - 1
    out_dtype = x.dtype
    w_dtype = (jnp.dtype(weight_dtype) if weight_dtype is not None
               else jnp.dtype(cheby_coeffs.dtype))

    # ---- Glue (fused by jit): weight permute, C padding, degree-0 bias fold.
    w_full = jnp.transpose(cheby_coeffs, (2, 0, 1))             # (D+1, C, O)
    bias = jnp.sum(w_full[0].astype(jnp.float32), axis=0)       # (O,)  T_0 == 1

    if degree == 0:
        # Degenerate: output is constant (independent of x). Plain JAX.
        return jnp.broadcast_to(bias[None, :], (B, O)).astype(out_dtype)

    # Pad the input-feature dim to a multiple of 128 so each degree segment of
    # the feature matrix is lane-aligned (the padded weight rows are zero, so
    # the nonzero T_d of padded x columns contribute nothing).
    C_pad = _round_up(C, 128)
    K = degree * C_pad
    w = w_full[1:]                                              # (D, C, O)
    if C_pad != C:
        w = jnp.pad(w, ((0, 0), (0, C_pad - C), (0, 0)))
    w = w.reshape(K, O).astype(w_dtype)

    # ---- Tile sizes.
    itemsize_w = w_dtype.itemsize
    itemsize_x = jnp.dtype(x.dtype).itemsize
    itemsize_o = jnp.dtype(out_dtype).itemsize

    # Output tile: multiple of 128 (lane-dense, unmasked stores); pick the
    # candidate that minimizes O padding, preferring the larger tile on ties.
    tn = min((128, 256, 512), key=lambda t: (_round_up(O, t), -t))
    # Batch tile: multiple of 8, grown to amortize weight re-streams.
    tm = min(512, _round_up(B, 8))

    def vmem_bytes(tm_, tn_):
        return (2 * K * tn_ * itemsize_w          # double-buffered weight tile
                + 2 * tm_ * C_pad * itemsize_x    # double-buffered x tile
                + 2 * tm_ * tn_ * itemsize_o      # double-buffered output tile
                + 2 * 8 * tn_ * 4                 # bias tile (tiny)
                + tm_ * K * itemsize_w            # persistent feature scratch
                + tm_ * tn_ * 4)                  # f32 accumulator temp

    budget = 32 << 20   # fits v7x (64 MiB physical) with headroom; ample on v5e/v6e
    while vmem_bytes(tm, tn) > budget and tn > 128:
        tn //= 2
    while vmem_bytes(tm, tn) > budget and tm > 8:
        tm = max(8, tm // 2)

    B_pad = _round_up(B, tm)
    O_pad = _round_up(O, tn)

    # ---- Zero-pad operands so the grid divides evenly (sliced off at the end).
    x_p = x
    if C_pad != C or B_pad != B:
        x_p = jnp.pad(x, ((0, B_pad - B), (0, C_pad - C)))
    w_p = w if O_pad == O else jnp.pad(w, ((0, 0), (0, O_pad - O)))
    bias_p = bias if O_pad == O else jnp.pad(bias, (0, O_pad - O))
    bias_p = bias_p.reshape(1, O_pad)

    grid = (B_pad // tm, O_pad // tn)
    kernel = functools.partial(_cheby_kan_kernel, degree=degree, c_pad=C_pad)

    y_pad = pl.pallas_call(
        kernel,
        out_shape=jax.ShapeDtypeStruct((B_pad, O_pad), out_dtype),
        grid_spec=pltpu.PrefetchScalarGridSpec(
            num_scalar_prefetch=0,
            grid=grid,
            in_specs=[
                pl.BlockSpec((tm, C_pad), lambda i, j: (i, 0)),
                pl.BlockSpec((K, tn), lambda i, j: (0, j)),
                pl.BlockSpec((1, tn), lambda i, j: (0, j)),
            ],
            out_specs=pl.BlockSpec((tm, tn), lambda i, j: (i, j)),
            scratch_shapes=[pltpu.VMEM((tm, K), w_dtype)],
        ),
        compiler_params=pltpu.CompilerParams(
            # Batch axis parallel (megacore sharding on v7x); output axis
            # arbitrary so the per-batch-tile feature scratch is reused
            # across every output tile.
            dimension_semantics=("parallel", "arbitrary"),
            vmem_limit_bytes=64 << 20,
        ),
    )(x_p, w_p, bias_p)

    return y_pad[:B, :O]


def cheby_kan_linear_ref(x, cheby_coeffs):
    """Pure-JAX reference mirroring the PyTorch forward exactly."""
    degree = cheby_coeffs.shape[-1] - 1
    xf = x.astype(jnp.float32)
    t = jnp.tanh(jnp.tanh(xf))[:, :, None]                      # (B, C, 1)
    t = jnp.broadcast_to(t, t.shape[:2] + (degree + 1,))
    theta = jnp.arccos(t)
    ar = jnp.arange(degree + 1, dtype=jnp.float32)
    T = jnp.cos(theta * ar)                                     # (B, C, D+1)
    y = jnp.einsum('bid,iod->bo', T, cheby_coeffs.astype(jnp.float32))
    return y.astype(x.dtype)


if __name__ == "__main__":
    # Small shapes consistent with the module: (batch, input_dim) -> (batch, output_dim)
    batch, input_dim, output_dim, degree = 16, 32, 16, 3

    key = jax.random.PRNGKey(0)
    k_x, k_w = jax.random.split(key)

    x = jax.random.normal(k_x, (batch, input_dim), dtype=jnp.float32)
    # nn.init.normal_(mean=0, std=1/(input_dim*(degree+1)))
    std = 1.0 / (input_dim * (degree + 1))
    cheby_coeffs = std * jax.random.normal(
        k_w, (input_dim, output_dim, degree + 1), dtype=jnp.float32)

    y_ref = cheby_kan_linear_ref(x, cheby_coeffs)

    # f32 weight path (tight tolerance).
    fwd = jax.jit(cheby_kan_linear)
    y = jax.block_until_ready(fwd(x, cheby_coeffs))
    assert y.shape == (batch, output_dim)
    assert jnp.allclose(y, y_ref, atol=2e-5, rtol=1e-4), "f32 mismatch vs reference"

    # bf16 weight/feature path (halved weight HBM traffic, native bf16 MXU),
    # validated against the f32 reference with a looser tolerance.
    fwd_bf16 = jax.jit(functools.partial(cheby_kan_linear, weight_dtype=jnp.bfloat16))
    y_bf16 = jax.block_until_ready(fwd_bf16(x, cheby_coeffs))
    assert y_bf16.shape == (batch, output_dim)
    assert jnp.allclose(y_bf16, y_ref, atol=1e-2, rtol=5e-2), "bf16 mismatch vs reference"

    print("KERNEL_OK")
</pallas_src>

<mosaic_0001>
module attributes {stable_mosaic.version = 11 : i64} {
  func.func @_cheby_kan_kernel(%arg0: i32, %arg1: i32, %arg2: memref<16x128xf32, #tpu.memory_space<vmem>>, %arg3: memref<384x128xf32, #tpu.memory_space<vmem>>, %arg4: memref<1x128xf32, #tpu.memory_space<vmem>>, %arg5: memref<16x128xf32, #tpu.memory_space<vmem>>, %arg6: memref<16x384xf32, #tpu.memory_space<vmem>>) attributes {dimension_semantics = [#tpu.dimension_semantics<parallel>, #tpu.dimension_semantics<arbitrary>], iteration_bounds = array<i64: 1, 1>, scalar_prefetch = 0 : i64, scratch_operands = 1 : i64, tpu.core_type = #tpu.core_type<tc>, window_params = [{transform_indices = @transform_0, window_bounds = array<i64: 16, 128>}, {transform_indices = @transform_1, window_bounds = array<i64: 384, 128>}, {transform_indices = @transform_2, window_bounds = array<i64: 1, 128>}, {transform_indices = @transform_3, window_bounds = array<i64: 16, 128>}]} {
    %c0_i32 = arith.constant 0 : i32
    %0 = arith.cmpi eq, %arg1, %c0_i32 : i32
    %1 = arith.extui %0 : i1 to i32
    %c0_i32_0 = arith.constant 0 : i32
    %2 = arith.cmpi ne, %1, %c0_i32_0 : i32
    scf.if %2 {
      %c0_8 = arith.constant 0 : index
      %c0_9 = arith.constant 0 : index
      %10 = vector.load %arg2[%c0_8, %c0_9] : memref<16x128xf32, #tpu.memory_space<vmem>>, vector<16x128xf32>
      %11 = math.tanh %10 : vector<16x128xf32>
      %12 = math.tanh %11 : vector<16x128xf32>
      %c0_10 = arith.constant 0 : index
      %c0_11 = arith.constant 0 : index
      %13 = vector.load %arg6[%c0_10, %c0_11] : memref<16x384xf32, #tpu.memory_space<vmem>>, vector<16x128xf32>
      tpu.vector_store %arg6[%c0_10, %c0_11], %12 {strides = array<i32>} : memref<16x384xf32, #tpu.memory_space<vmem>>, vector<16x128xf32>,
      %cst_12 = arith.constant 1.000000e+00 : f32
      %14 = vector.broadcast %cst_12 : f32 to vector<16x128xf32>
      %cst_13 = arith.constant 2.000000e+00 : f32
      %15 = vector.broadcast %cst_13 : f32 to vector<16x128xf32>
      %16 = arith.mulf %15, %12 : vector<16x128xf32>
      %17 = arith.mulf %16, %12 : vector<16x128xf32>
      %18 = arith.subf %17, %14 : vector<16x128xf32>
      %c0_14 = arith.constant 0 : index
      %c128 = arith.constant 128 : index
      %19 = vector.load %arg6[%c0_14, %c128] : memref<16x384xf32, #tpu.memory_space<vmem>>, vector<16x128xf32>
      tpu.vector_store %arg6[%c0_14, %c128], %18 {strides = array<i32>} : memref<16x384xf32, #tpu.memory_space<vmem>>, vector<16x128xf32>,
      %cst_15 = arith.constant 2.000000e+00 : f32
      %20 = vector.broadcast %cst_15 : f32 to vector<16x128xf32>
      %21 = arith.mulf %20, %12 : vector<16x128xf32>
      %22 = arith.mulf %21, %18 : vector<16x128xf32>
      %23 = arith.subf %22, %12 : vector<16x128xf32>
      %c0_16 = arith.constant 0 : index
      %c256 = arith.constant 256 : index
      %24 = vector.load %arg6[%c0_16, %c256] : memref<16x384xf32, #tpu.memory_space<vmem>>, vector<16x128xf32>
      tpu.vector_store %arg6[%c0_16, %c256], %23 {strides = array<i32>} : memref<16x384xf32, #tpu.memory_space<vmem>>, vector<16x128xf32>,
    } else {
    }
    %c0 = arith.constant 0 : index
    %c0_1 = arith.constant 0 : index
    %3 = vector.load %arg6[%c0, %c0_1] : memref<16x384xf32, #tpu.memory_space<vmem>>, vector<16x384xf32>
    %c0_2 = arith.constant 0 : index
    %c0_3 = arith.constant 0 : index
    %4 = vector.load %arg3[%c0_2, %c0_3] : memref<384x128xf32, #tpu.memory_space<vmem>>, vector<384x128xf32>
    %cst = arith.constant dense<0.000000e+00> : vector<16x128xf32>
    %5 = tpu.matmul %3, %4, %cst {dimension_numbers = #tpu.dot_dimension_numbers<[1], [0], [0], [1], [0, 0, 1, 1], [], []>} : vector<16x384xf32>, vector<384x128xf32>, vector<16x128xf32> -> vector<16x128xf32>
    %c0_4 = arith.constant 0 : index
    %c0_5 = arith.constant 0 : index
    %6 = vector.load %arg4[%c0_4, %c0_5] : memref<1x128xf32, #tpu.memory_space<vmem>>, vector<1x128xf32>
    %7 = vector.broadcast %6 : vector<1x128xf32> to vector<16x128xf32>
    %8 = arith.addf %5, %7 : vector<16x128xf32>
    %c0_6 = arith.constant 0 : index
    %c0_7 = arith.constant 0 : index
    %9 = vector.load %arg5[%c0_6, %c0_7] : memref<16x128xf32, #tpu.memory_space<vmem>>, vector<16x128xf32>
    tpu.vector_store %arg5[%c0_6, %c0_7], %8 {strides = array<i32>} : memref<16x128xf32, #tpu.memory_space<vmem>>, vector<16x128xf32>,
    return
  }
  func.func @transform_0(%arg0: i32, %arg1: i32) -> (i32, i32) {
    %c0_i32 = arith.constant 0 : i32
    %c0_i32_0 = arith.constant 0 : i32
    return %arg0, %c0_i32 : i32, i32
  }
  func.func @transform_1(%arg0: i32, %arg1: i32) -> (i32, i32) {
    %c0_i32 = arith.constant 0 : i32
    %c0_i32_0 = arith.constant 0 : i32
    return %c0_i32, %arg1 : i32, i32
  }
  func.func @transform_2(%arg0: i32, %arg1: i32) -> (i32, i32) {
    %c0_i32 = arith.constant 0 : i32
    %c0_i32_0 = arith.constant 0 : i32
    return %c0_i32, %arg1 : i32, i32
  }
  func.func @transform_3(%arg0: i32, %arg1: i32) -> (i32, i32) {
    %c0_i32 = arith.constant 0 : i32
    return %arg0, %arg1 : i32, i32
  }
}

</mosaic_0001>

<llo_original>
// kernel: cheby_kan_linear.1
$region0: #{cheby_kan_linear.1}
  #allocation0 [shape = 'u32[]', space=smem, size = 0x4, offset = 0x4, fixed_abs, tag = 'smem constant byte address 0x4 - core index']
  #allocation1 [shape = 'u32[72,128]{1,0:T(1,128)}', space=vmem, size = 0x9000, scoped, tag = 'internal scratch']
  #allocation2 [shape = 'f32[16,384]{1,0:T(8,128)}', space=vmem, size = 0x6000, scoped, tag = 'scratch operand']
  %s0 = inlined_call_operand.vmem [shape: f32[16,128], index: 0, kind: input, shape index: {}]
  %s1 = inlined_call_operand.vmem [shape: f32[384,128], index: 1, kind: input, shape index: {}]
  %s2 = inlined_call_operand.vmem [shape: f32[1,128], index: 2, kind: input, shape index: {}]
  %s3 = inlined_call_operand.hbm [shape: f32[16,128], index: 3, kind: output, shape index: {}]
  %s4 = sld [smem:[#allocation0]]
  $region26: #{cheby_kan_linear.1} parent=0
    _
  %s6 = ssub.s32 1, %s4
  %s7 = scalar_select 0, %s6, %s4
  $region1: #{cheby_kan_linear.1} parent=0
    #allocation3 [shape = 'u8[8192]{0}', space=vmem, size = 0x2000, scoped, tag = 'output window, operand 0, single buffered']
    #allocation4 [shape = 's32[1]{0}', space=sflag, size = 0x4, scoped, tag = 'scoped memory for cheby_kan_linear.1']
    %8 = vsyncpa [#allocation4], 0
    // Predicated region
    $region2: #{cheby_kan_linear.1} parent=1 // pred_check
      _
    $region3: #{cheby_kan_linear.1} parent=1 // pred_check_branch
      %10 = sbr.rel (0) target = $region5
    $region4: #{cheby_kan_linear.1} parent=1 // pred_region
      _
    $region5: #{cheby_kan_linear.1} parent=1 // pred_fallthru
      _
    // Predicated region
    $region6: #{cheby_kan_linear.1} parent=1 // pred_check
      _
    $region7: #{cheby_kan_linear.1} parent=1 // pred_check_branch
      %12 = sbr.rel (0) target = $region9
    $region8: #{cheby_kan_linear.1} parent=1 // pred_region
      _
    $region9: #{cheby_kan_linear.1} parent=1 // pred_fallthru
      _
    // Predicated region
    $region10: #{cheby_kan_linear.1} parent=1 // pred_check
      _
    $region11: #{cheby_kan_linear.1} parent=1 // pred_check_branch
      %14 = sbr.rel (0) target = $region13
    $region12: #{cheby_kan_linear.1} parent=1 // pred_region
      _
    $region13: #{cheby_kan_linear.1} parent=1 // pred_fallthru
      _
    %p15 = scmp.eq.s32.totalorder 0, 0
    // Predicated region
    $region14: #{cheby_kan_linear.1} parent=1 // pred_check
      %p16 = pneg %p15
    $region15: #{cheby_kan_linear.1} parent=1 // pred_check_branch
      %18 = sbr.rel (%p16) target = $region17
    $region16: #{cheby_kan_linear.1} parent=1 // pred_region
      %v19 = vld [vmem:[%s0] sm:$0xff]
      %v20 = vld [vmem:[%s0 + $0x8] sm:$0xff]
      %v21 = vtanh.pop %v19
      %v22 = vtanh.pop %v20
      %v23 = vtanh.pop %v21
      %v24 = vtanh.pop %v22
      %25 = vst [vmem:[#allocation2] sm:$0xff] %v23
      %26 = vst [vmem:[#allocation2 + $0x18] sm:$0xff] %v24
      %v27 = vmul.f32 %v23, 2.0
      %v28 = vmul.f32 %v24, 2.0
      %v29 = vmul.f32 %v27, %v23
      %v30 = vmul.f32 %v28, %v24
      %v31 = vsub.f32 %v29, 1.0
      %v32 = vsub.f32 %v30, 1.0
      %33 = vst [vmem:[#allocation2 + $0x8] sm:$0xff] %v31
      %34 = vst [vmem:[#allocation2 + $0x20] sm:$0xff] %v32
      %v35 = vmul.f32 %v27, %v31
      %v36 = vmul.f32 %v28, %v32
      %v37 = vsub.f32 %v35, %v23
      %v38 = vsub.f32 %v36, %v24
      %39 = vst [vmem:[#allocation2 + $0x10] sm:$0xff] %v37
      %40 = vst [vmem:[#allocation2 + $0x28] sm:$0xff] %v38
    $region17: #{cheby_kan_linear.1} parent=1 // pred_fallthru
      _
    %v41 = vld [vmem:[#allocation2] sm:$0xff]
    %v42 = vld [vmem:[#allocation2 + $0x8] sm:$0xff]
    %v43 = vld [vmem:[#allocation2 + $0x10] sm:$0xff]
    %v44 = vld [vmem:[#allocation2 + $0x18] sm:$0xff]
    %v45 = vld [vmem:[#allocation2 + $0x20] sm:$0xff]
    %v46 = vld [vmem:[#allocation2 + $0x28] sm:$0xff]
    %v47 = vld [vmem:[%s1] sm:$0xff]
    %v48 = vld [vmem:[%s1 + $0x8] sm:$0xff]
    %v49 = vld [vmem:[%s1 + $0x10] sm:$0xff]
    %v50 = vld [vmem:[%s1 + $0x18] sm:$0xff]
    %v51 = vld [vmem:[%s1 + $0x20] sm:$0xff]
    %v52 = vld [vmem:[%s1 + $0x28] sm:$0xff]
    %v53 = vld [vmem:[%s1 + $0x30] sm:$0xff]
    %v54 = vld [vmem:[%s1 + $0x38] sm:$0xff]
    %v55 = vld [vmem:[%s1 + $0x40] sm:$0xff]
    %v56 = vld [vmem:[%s1 + $0x48] sm:$0xff]
    %v57 = vld [vmem:[%s1 + $0x50] sm:$0xff]
    %v58 = vld [vmem:[%s1 + $0x58] sm:$0xff]
    %v59 = vld [vmem:[%s1 + $0x60] sm:$0xff]
    %v60 = vld [vmem:[%s1 + $0x68] sm:$0xff]
    %v61 = vld [vmem:[%s1 + $0x70] sm:$0xff]
    %v62 = vld [vmem:[%s1 + $0x78] sm:$0xff]
    %v63 = vld [vmem:[%s1 + $0x80] sm:$0xff]
    %v64 = vld [vmem:[%s1 + $0x88] sm:$0xff]
    %v65 = vld [vmem:[%s1 + $0x90] sm:$0xff]
    %v66 = vld [vmem:[%s1 + $0x98] sm:$0xff]
    %v67 = vld [vmem:[%s1 + $0xa0] sm:$0xff]
    %v68 = vld [vmem:[%s1 + $0xa8] sm:$0xff]
    %v69 = vld [vmem:[%s1 + $0xb0] sm:$0xff]
    %v70 = vld [vmem:[%s1 + $0xb8] sm:$0xff]
    %v71 = vld [vmem:[%s1 + $0xc0] sm:$0xff]
    %v72 = vld [vmem:[%s1 + $0xc8] sm:$0xff]
    %v73 = vld [vmem:[%s1 + $0xd0] sm:$0xff]
    %v74 = vld [vmem:[%s1 + $0xd8] sm:$0xff]
    %v75 = vld [vmem:[%s1 + $0xe0] sm:$0xff]
    %v76 = vld [vmem:[%s1 + $0xe8] sm:$0xff]
    %v77 = vld [vmem:[%s1 + $0xf0] sm:$0xff]
    %v78 = vld [vmem:[%s1 + $0xf8] sm:$0xff]
    %v79 = vld [vmem:[%s1 + $0x100] sm:$0xff]
    %v80 = vld [vmem:[%s1 + $0x108] sm:$0xff]
    %v81 = vld [vmem:[%s1 + $0x110] sm:$0xff]
    %v82 = vld [vmem:[%s1 + $0x118] sm:$0xff]
    %v83 = vld [vmem:[%s1 + $0x120] sm:$0xff]
    %v84 = vld [vmem:[%s1 + $0x128] sm:$0xff]
    %v85 = vld [vmem:[%s1 + $0x130] sm:$0xff]
    %v86 = vld [vmem:[%s1 + $0x138] sm:$0xff]
    %v87 = vld [vmem:[%s1 + $0x140] sm:$0xff]
    %v88 = vld [vmem:[%s1 + $0x148] sm:$0xff]
    %v89 = vld [vmem:[%s1 + $0x150] sm:$0xff]
    %v90 = vld [vmem:[%s1 + $0x158] sm:$0xff]
    %v91 = vld [vmem:[%s1 + $0x160] sm:$0xff]
    %v92 = vld [vmem:[%s1 + $0x168] sm:$0xff]
    %v93 = vld [vmem:[%s1 + $0x170] sm:$0xff]
    %v94 = vld [vmem:[%s1 + $0x178] sm:$0xff]
    %v95 = vld [vmem:[%s2] sm:$0x1]
    %v97 = vperm.slane %v95, 0
    %99 = vmatpush.msra.mxu0 %v62
    %100 = vmatpush.msra.mxu0 %v61
    %101 = vmatpush.msra.mxu0 %v60
    %102 = vmatpush.msra.mxu0 %v59
    %103 = vmatpush.msra.mxu0 %v58
    %104 = vmatpush.msra.mxu0 %v57
    %105 = vmatpush.msra.mxu0 %v56
    %106 = vmatpush.msra.mxu0 %v55
    %107 = vmatpush.msra.mxu0 %v54
    %108 = vmatpush.msra.mxu0 %v53
    %109 = vmatpush.msra.mxu0 %v52
    %110 = vmatpush.msra.mxu0 %v51
    %111 = vmatpush.msra.mxu0 %v50
    %112 = vmatpush.msra.mxu0 %v49
    %113 = vmatpush.msra.mxu0 %v48
    %114 = vmatpush.msra.mxu0 %v47
    %115 = vmatmul.f32.gmra.mxu0 %v41
    %v116 = vpop.f32.mrf.mxu0
    %v117 = vadd.f32 %v97, %v116
    %118 = vmatmul.f32.gmra.mxu0 %v44
    %v119 = vpop.f32.mrf.mxu0
    %v120 = vadd.f32 %v97, %v119
    %121 = vdwg.mxu0
    %122 = vmatpush.msra.mxu0 %v78
    %123 = vmatpush.msra.mxu0 %v77
    %124 = vmatpush.msra.mxu0 %v76
    %125 = vmatpush.msra.mxu0 %v75
    %126 = vmatpush.msra.mxu0 %v74
    %127 = vmatpush.msra.mxu0 %v73
    %128 = vmatpush.msra.mxu0 %v72
    %129 = vmatpush.msra.mxu0 %v71
    %130 = vmatpush.msra.mxu0 %v70
    %131 = vmatpush.msra.mxu0 %v69
    %132 = vmatpush.msra.mxu0 %v68
    %133 = vmatpush.msra.mxu0 %v67
    %134 = vmatpush.msra.mxu0 %v66
    %135 = vmatpush.msra.mxu0 %v65
    %136 = vmatpush.msra.mxu0 %v64
    %137 = vmatpush.msra.mxu0 %v63
    %138 = vmatmul.f32.gmra.mxu0 %v42
    %v139 = vpop.f32.mrf.mxu0
    %v140 = vadd.f32 %v117, %v139
    %141 = vmatmul.f32.gmra.mxu0 %v45
    %v142 = vpop.f32.mrf.mxu0
    %v143 = vadd.f32 %v120, %v142
    %144 = vdwg.mxu0
    %145 = vmatpush.msra.mxu0 %v94
    %146 = vmatpush.msra.mxu0 %v93
    %147 = vmatpush.msra.mxu0 %v92
    %148 = vmatpush.msra.mxu0 %v91
    %149 = vmatpush.msra.mxu0 %v90
    %150 = vmatpush.msra.mxu0 %v89
    %151 = vmatpush.msra.mxu0 %v88
    %152 = vmatpush.msra.mxu0 %v87
    %153 = vmatpush.msra.mxu0 %v86
    %154 = vmatpush.msra.mxu0 %v85
    %155 = vmatpush.msra.mxu0 %v84
    %156 = vmatpush.msra.mxu0 %v83
    %157 = vmatpush.msra.mxu0 %v82
    %158 = vmatpush.msra.mxu0 %v81
    %159 = vmatpush.msra.mxu0 %v80
    %160 = vmatpush.msra.mxu0 %v79
    %161 = vmatmul.f32.gmra.mxu0 %v43
    %v162 = vpop.f32.mrf.mxu0
    %v163 = vadd.f32 %v140, %v162
    %164 = vmatmul.f32.gmra.mxu0 %v46
    %v165 = vpop.f32.mrf.mxu0
    %v166 = vadd.f32 %v143, %v165
    %167 = vdwg.mxu0
    %168 = vst [vmem:[#allocation3] sm:$0xff] %v163
    %169 = vst [vmem:[#allocation3 + $0x8] sm:$0xff] %v166
    // Predicated region
    $region18: #{cheby_kan_linear.1} parent=1 // pred_check
      _
    $region19: #{cheby_kan_linear.1} parent=1 // pred_check_branch
      %171 = sbr.rel (0) target = $region21
    $region20: #{cheby_kan_linear.1} parent=1 // pred_region
      %173 = vsyncadd [#allocation4], 0
      %s174 = sshll.u32 [#allocation3], 4
      %s175 = int_to_ptr.vmem [resolvable:$true] %s174
      %s176 = sshll.u32 %s3, 4
      %s177 = int_to_ptr.hbm [resolvable:$true] %s176
      %182 = dma.vmem_to_hbm [thread:$0]  %s175, 256, %s177, [#allocation4], 128, 128, 8
    $region21: #{cheby_kan_linear.1} parent=1 // pred_fallthru
      _
    // Predicated region
    $region22: #{cheby_kan_linear.1} parent=1 // pred_check
      _
    $region23: #{cheby_kan_linear.1} parent=1 // pred_check_branch
      %184 = sbr.rel (0) target = $region25
    $region24: #{cheby_kan_linear.1} parent=1 // pred_region
      %186 = dma.done [#allocation4], 256
    $region25: #{cheby_kan_linear.1} parent=1 // pred_fallthru
      _
    %187 = vsyncpa [#allocation4], 1

</llo_original>
